<compile_context>
chip_gen: v7x
topology: tpu7x:2x2x1
jax: 0.10.0
libtpu: 0.0.40
codegen_flags: <defaults>
</compile_context>

<pallas_src>
import functools

import jax
import jax.numpy as jnp
from jax.experimental import pallas as pl
from jax.experimental.pallas import tpu as pltpu


def _round_up(a: int, b: int) -> int:
    return ((a + b - 1) // b) * b


def _vmem_budget_bytes() -> int:
    """Scoped-VMEM budget: ~3/4 of per-core VMEM (headroom for Mosaic internal
    scratch), capped at 112 MiB.  Falls back to 48 MiB (safe on v5e/v6e/v7x)
    when the hardware can't be queried (e.g. interpret mode on CPU)."""
    cap = None
    try:
        cap = getattr(pltpu.get_tpu_info(), "vmem_capacity_bytes", None)
    except Exception:
        cap = None
    if not cap:
        cap = 64 * 1024 * 1024          # conservative: v7x per-TC physical
    return min((int(cap) * 3) // 4, 112 * 1024 * 1024)


def _vmem_usage_bytes(tm, th, D, D_out, out_itemsize, apply_dropout) -> int:
    """Rough per-step VMEM footprint (double-buffered inputs/outputs + scratch
    + compiler temps for the (tm, th) hidden activation)."""
    use = 2 * tm * D * 2                      # x tile, double-buffered bf16
    use += 2 * D * th * 2                     # W1^T chunk
    use += 2 * th * D_out * 2                 # W2^T chunk
    use += 2 * tm * D_out * out_itemsize      # output tile
    use += tm * D_out * 4                     # f32 accumulator scratch
    use += tm * th * 8                        # f32 hid + bf16 cast (temps)
    use += 2 * (th + D_out) * 4               # biases
    if apply_dropout:
        use += 2 * tm * th * 2                # keep-mask tile
        use += tm * th * 4                    # mask -> f32 temp
    return use


def _ffn_kernel(*refs, apply_dropout: bool, keep_scale: float):
    if apply_dropout:
        x_ref, w1_ref, b1_ref, w2_ref, b2_ref, mask_ref, o_ref, acc_ref = refs
    else:
        x_ref, w1_ref, b1_ref, w2_ref, b2_ref, o_ref, acc_ref = refs

    j = pl.program_id(1)
    nj = pl.num_programs(1)

    @pl.when(j == 0)
    def _init():
        acc_ref[...] = jnp.zeros_like(acc_ref)

    # fc1 chunk: hid = relu(x_tile @ W1t_chunk + b1_chunk)   -> (tm, th) f32
    hid = jnp.dot(x_ref[...], w1_ref[...], preferred_element_type=jnp.float32)
    hid = jnp.maximum(hid + b1_ref[...], 0.0)

    if apply_dropout:
        # Inverted dropout with a precomputed 0/1 keep mask.
        hid = hid * mask_ref[...].astype(jnp.float32) * keep_scale

    # fc2 chunk: accumulate hid @ W2t_chunk into the f32 accumulator
    acc_ref[...] += jnp.dot(hid.astype(w2_ref.dtype), w2_ref[...],
                            preferred_element_type=jnp.float32)

    @pl.when(j == nj - 1)
    def _finalize():
        o_ref[...] = (acc_ref[...] + b2_ref[...]).astype(o_ref.dtype)


def pallas_feed_forward(x, w1, b1, w2, b2, *,
                        dropout_rate=0.0, deterministic=True, seed=0,
                        block_m=512, block_h=512,
                        compute_dtype=jnp.bfloat16, out_dtype=jnp.bfloat16):
    """x: (B, S, D); w1: (H, D), b1: (H,), w2: (D_out, H), b2: (D_out,)
    in PyTorch nn.Linear layout.  Returns (B, S, D_out) in out_dtype."""
    B, S, D = x.shape
    H, D_in = w1.shape
    D_out, H2 = w2.shape
    assert D_in == D and H2 == H

    apply_dropout = (not deterministic) and dropout_rate > 0.0
    out_itemsize = jnp.dtype(out_dtype).itemsize
    M = B * S

    # Hidden dim padded to a lane multiple so W1/W2 can be chunked legally.
    Hp = _round_up(H, 128)

    # ---- tile selection ----------------------------------------------------
    budget = _vmem_budget_bytes()

    # Row tile: arithmetic intensity vs. weight (re)streaming scales with tm,
    # so take the biggest tile that fits, but keep >= 2 row tiles so the
    # "parallel" grid axis shards across both v7x TensorCores.
    tm = min(block_m, _round_up(M, 8))
    if M >= 16:
        tm = min(tm, _round_up((M + 1) // 2, 8))

    # Hidden chunk: weight-resident (th = Hp, weights DMA'd once, revisited
    # across all row tiles) when W1+W2 comfortably fit the VMEM budget;
    # otherwise the largest 128-multiple divisor of Hp that is <= block_h.
    weight_bytes = 2 * 2 * (D * Hp + Hp * D_out)       # double-buffered bf16
    if weight_bytes <= budget // 2:
        th = Hp
    else:
        th = 128
        cand = 128
        while cand <= min(block_h, Hp):
            if Hp % cand == 0:
                th = cand
            cand += 128

    # Shrink until the tiles fit the budget (th first, then tm).
    while _vmem_usage_bytes(tm, th, D, D_out, out_itemsize, apply_dropout) > budget:
        if th > 128 and (th // 2) % 128 == 0 and Hp % (th // 2) == 0:
            th //= 2
        elif tm > 8:
            tm = max(8, _round_up(tm // 2, 8))
        else:
            break

    M_pad = _round_up(M, tm)

    # ---- one-time operand prep (outside the kernel) ------------------------
    x2d = x.reshape(M, D)
    if M_pad != M:
        x2d = jnp.pad(x2d, ((0, M_pad - M), (0, 0)))
    x2d = x2d.astype(compute_dtype)

    # Pre-transpose once so both matmuls contract LHS-last against RHS-sublane
    # (no per-step XLU transpose of weight tiles inside the kernel).
    w1t = jnp.pad(w1.T, ((0, 0), (0, Hp - H))).astype(compute_dtype)   # (D, Hp)
    w2t = jnp.pad(w2.T, ((0, Hp - H), (0, 0))).astype(compute_dtype)   # (Hp, D_out)
    b1r = jnp.pad(b1, (0, Hp - H)).reshape(1, Hp).astype(jnp.float32)
    b2r = b2.reshape(1, D_out).astype(jnp.float32)

    inputs = [x2d, w1t, b1r, w2t, b2r]
    in_specs = [
        pl.BlockSpec((tm, D), lambda i, j: (i, 0)),        # x row tile
        pl.BlockSpec((D, th), lambda i, j: (0, j)),        # W1^T chunk
        pl.BlockSpec((1, th), lambda i, j: (0, j)),        # b1 chunk
        pl.BlockSpec((th, D_out), lambda i, j: (j, 0)),    # W2^T chunk
        pl.BlockSpec((1, D_out), lambda i, j: (0, 0)),     # b2
    ]

    mask_bytes = 0
    if apply_dropout:
        key = jax.random.PRNGKey(seed)
        keep = jax.random.bernoulli(key, 1.0 - float(dropout_rate), (M_pad, Hp))
        inputs.append(keep.astype(compute_dtype))
        in_specs.append(pl.BlockSpec((tm, th), lambda i, j: (i, j)))
        mask_bytes = M_pad * Hp * jnp.dtype(compute_dtype).itemsize

    kernel = functools.partial(
        _ffn_kernel,
        apply_dropout=apply_dropout,
        keep_scale=float(1.0 / (1.0 - dropout_rate)) if apply_dropout else 1.0)

    flops = 2 * M * H * (D + D_out)
    bytes_accessed = (2 * (M * D + D * Hp + Hp * D_out)
                      + M * D_out * out_itemsize + mask_bytes)

    grid_spec = pltpu.PrefetchScalarGridSpec(
        num_scalar_prefetch=0,
        grid=(M_pad // tm, Hp // th),
        in_specs=in_specs,
        out_specs=pl.BlockSpec((tm, D_out), lambda i, j: (i, 0)),
        scratch_shapes=[pltpu.VMEM((tm, D_out), jnp.float32)],
    )

    out2d = pl.pallas_call(
        kernel,
        grid_spec=grid_spec,
        out_shape=jax.ShapeDtypeStruct((M_pad, D_out), out_dtype),
        compiler_params=pltpu.CompilerParams(
            dimension_semantics=("parallel", "arbitrary"),
            vmem_limit_bytes=budget),
        cost_estimate=pl.CostEstimate(flops=flops, transcendentals=0,
                                      bytes_accessed=bytes_accessed),
    )(*inputs)

    return out2d[:M].reshape(B, S, D_out)


def reference_forward(x, w1, b1, w2, b2, compute_dtype=jnp.bfloat16):
    """Pure-JAX reference mirroring the kernel's precision choices
    (bf16 matmul operands, f32 accumulation, f32 biases)."""
    cast = lambda a: a.astype(compute_dtype).astype(jnp.float32)
    h = jnp.maximum(cast(x) @ cast(w1).T + b1, 0.0)
    return cast(h) @ cast(w2).T + b2


if __name__ == "__main__":
    # Small shapes consistent with the module (dim -> hidden_dim -> dim).
    B, S, D, H = 2, 8, 64, 128

    key = jax.random.PRNGKey(0)
    kx, k1, k2, k3, k4 = jax.random.split(key, 5)

    # PyTorch nn.Linear default init: U(-1/sqrt(fan_in), 1/sqrt(fan_in)).
    bound1 = 1.0 / (D ** 0.5)
    bound2 = 1.0 / (H ** 0.5)
    w1 = jax.random.uniform(k1, (H, D), jnp.float32, -bound1, bound1)
    b1 = jax.random.uniform(k2, (H,), jnp.float32, -bound1, bound1)
    w2 = jax.random.uniform(k3, (D, H), jnp.float32, -bound2, bound2)
    b2 = jax.random.uniform(k4, (D,), jnp.float32, -bound2, bound2)
    x = jax.random.normal(kx, (B, S, D), jnp.float32)

    # Inference path (dropout = identity): checked against the reference.
    out = pallas_feed_forward(x, w1, b1, w2, b2,
                              dropout_rate=0.1, deterministic=True)
    out = jax.block_until_ready(out)
    ref = reference_forward(x, w1, b1, w2, b2)
    assert out.shape == (B, S, D)
    err = float(jnp.max(jnp.abs(out.astype(jnp.float32) - ref)))
    assert err < 2e-2, err

    # Training path (precomputed keep-mask dropout): compile/run + sanity.
    out_drop = pallas_feed_forward(x, w1, b1, w2, b2,
                                   dropout_rate=0.1, deterministic=False,
                                   seed=42)
    out_drop = jax.block_until_ready(out_drop)
    assert out_drop.shape == (B, S, D)
    assert bool(jnp.all(jnp.isfinite(out_drop.astype(jnp.float32))))

    print("KERNEL_OK")
</pallas_src>

<mosaic_0001>
module attributes {stable_mosaic.version = 11 : i64} {
  func.func @_ffn_kernel(%arg0: i32, %arg1: i32, %arg2: memref<8x64xbf16, #tpu.memory_space<vmem>>, %arg3: memref<64x128xbf16, #tpu.memory_space<vmem>>, %arg4: memref<1x128xf32, #tpu.memory_space<vmem>>, %arg5: memref<128x64xbf16, #tpu.memory_space<vmem>>, %arg6: memref<1x64xf32, #tpu.memory_space<vmem>>, %arg7: memref<8x64xbf16, #tpu.memory_space<vmem>>, %arg8: memref<8x64xf32, #tpu.memory_space<vmem>>) attributes {dimension_semantics = [#tpu.dimension_semantics<parallel>, #tpu.dimension_semantics<arbitrary>], iteration_bounds = array<i64: 2, 1>, scalar_prefetch = 0 : i64, scratch_operands = 1 : i64, tpu.core_type = #tpu.core_type<tc>, window_params = [{transform_indices = @transform_0, window_bounds = array<i64: 8, 64>}, {transform_indices = @transform_1, window_bounds = array<i64: 64, 128>}, {transform_indices = @transform_2, window_bounds = array<i64: 1, 128>}, {transform_indices = @transform_3, window_bounds = array<i64: 128, 64>}, {pipeline_mode = #tpu.pipeline_mode<synchronous>, transform_indices = @transform_4, window_bounds = array<i64: 1, 64>}, {transform_indices = @transform_5, window_bounds = array<i64: 8, 64>}]} {
    %c0_i32 = arith.constant 0 : i32
    %0 = arith.cmpi eq, %arg1, %c0_i32 : i32
    %1 = arith.extui %0 : i1 to i32
    %c0_i32_0 = arith.constant 0 : i32
    %2 = arith.cmpi ne, %1, %c0_i32_0 : i32
    scf.if %2 {
      %cst_16 = arith.constant 0.000000e+00 : f32
      %20 = vector.broadcast %cst_16 : f32 to vector<8x64xf32>
      %c0_17 = arith.constant 0 : index
      %c0_18 = arith.constant 0 : index
      %21 = vector.load %arg8[%c0_17, %c0_18] : memref<8x64xf32, #tpu.memory_space<vmem>>, vector<8x64xf32>
      tpu.vector_store %arg8[%c0_17, %c0_18], %20 {strides = array<i32>} : memref<8x64xf32, #tpu.memory_space<vmem>>, vector<8x64xf32>,
    } else {
    }
    %c0 = arith.constant 0 : index
    %c0_1 = arith.constant 0 : index
    %3 = vector.load %arg2[%c0, %c0_1] : memref<8x64xbf16, #tpu.memory_space<vmem>>, vector<8x64xbf16>
    %c0_2 = arith.constant 0 : index
    %c0_3 = arith.constant 0 : index
    %4 = vector.load %arg3[%c0_2, %c0_3] : memref<64x128xbf16, #tpu.memory_space<vmem>>, vector<64x128xbf16>
    %cst = arith.constant dense<0.000000e+00> : vector<8x128xf32>
    %5 = tpu.matmul %3, %4, %cst {dimension_numbers = #tpu.dot_dimension_numbers<[1], [0], [0], [1], [0, 0, 1, 1], [], []>} : vector<8x64xbf16>, vector<64x128xbf16>, vector<8x128xf32> -> vector<8x128xf32>
    %c0_4 = arith.constant 0 : index
    %c0_5 = arith.constant 0 : index
    %6 = vector.load %arg4[%c0_4, %c0_5] : memref<1x128xf32, #tpu.memory_space<vmem>>, vector<1x128xf32>
    %7 = vector.broadcast %6 : vector<1x128xf32> to vector<8x128xf32>
    %8 = arith.addf %5, %7 : vector<8x128xf32>
    %cst_6 = arith.constant 0.000000e+00 : f32
    %9 = vector.broadcast %cst_6 : f32 to vector<8x128xf32>
    %10 = arith.maximumf %8, %9 : vector<8x128xf32>
    %c0_7 = arith.constant 0 : index
    %c0_8 = arith.constant 0 : index
    %11 = vector.load %arg8[%c0_7, %c0_8] : memref<8x64xf32, #tpu.memory_space<vmem>>, vector<8x64xf32>
    %12 = arith.truncf %10 : vector<8x128xf32> to vector<8x128xbf16>
    %c0_9 = arith.constant 0 : index
    %c0_10 = arith.constant 0 : index
    %13 = vector.load %arg5[%c0_9, %c0_10] : memref<128x64xbf16, #tpu.memory_space<vmem>>, vector<128x64xbf16>
    %cst_11 = arith.constant dense<0.000000e+00> : vector<8x64xf32>
    %14 = tpu.matmul %12, %13, %cst_11 {dimension_numbers = #tpu.dot_dimension_numbers<[1], [0], [0], [1], [0, 0, 1, 1], [], []>} : vector<8x128xbf16>, vector<128x64xbf16>, vector<8x64xf32> -> vector<8x64xf32>
    %15 = arith.addf %11, %14 : vector<8x64xf32>
    %c0_12 = arith.constant 0 : index
    %c0_13 = arith.constant 0 : index
    %16 = vector.load %arg8[%c0_12, %c0_13] : memref<8x64xf32, #tpu.memory_space<vmem>>, vector<8x64xf32>
    tpu.vector_store %arg8[%c0_12, %c0_13], %15 {strides = array<i32>} : memref<8x64xf32, #tpu.memory_space<vmem>>, vector<8x64xf32>,
    %c0_i32_14 = arith.constant 0 : i32
    %17 = arith.cmpi eq, %arg1, %c0_i32_14 : i32
    %18 = arith.extui %17 : i1 to i32
    %c0_i32_15 = arith.constant 0 : i32
    %19 = arith.cmpi ne, %18, %c0_i32_15 : i32
    scf.if %19 {
      %c0_16 = arith.constant 0 : index
      %c0_17 = arith.constant 0 : index
      %20 = vector.load %arg8[%c0_16, %c0_17] : memref<8x64xf32, #tpu.memory_space<vmem>>, vector<8x64xf32>
      %c0_18 = arith.constant 0 : index
      %c0_19 = arith.constant 0 : index
      %21 = vector.load %arg6[%c0_18, %c0_19] : memref<1x64xf32, #tpu.memory_space<vmem>>, vector<1x64xf32>
      %22 = vector.broadcast %21 : vector<1x64xf32> to vector<8x64xf32>
      %23 = arith.addf %20, %22 : vector<8x64xf32>
      %24 = arith.truncf %23 : vector<8x64xf32> to vector<8x64xbf16>
      %c0_20 = arith.constant 0 : index
      %c0_21 = arith.constant 0 : index
      %25 = vector.load %arg7[%c0_20, %c0_21] : memref<8x64xbf16, #tpu.memory_space<vmem>>, vector<8x64xbf16>
      tpu.vector_store %arg7[%c0_20, %c0_21], %24 {strides = array<i32>} : memref<8x64xbf16, #tpu.memory_space<vmem>>, vector<8x64xbf16>,
    } else {
    }
    return
  }
  func.func @transform_0(%arg0: i32, %arg1: i32) -> (i32, i32) {
    %c0_i32 = arith.constant 0 : i32
    %c0_i32_0 = arith.constant 0 : i32
    return %arg0, %c0_i32 : i32, i32
  }
  func.func @transform_1(%arg0: i32, %arg1: i32) -> (i32, i32) {
    %c0_i32 = arith.constant 0 : i32
    %c0_i32_0 = arith.constant 0 : i32
    return %c0_i32, %arg1 : i32, i32
  }
  func.func @transform_2(%arg0: i32, %arg1: i32) -> (i32, i32) {
    %c0_i32 = arith.constant 0 : i32
    %c0_i32_0 = arith.constant 0 : i32
    return %c0_i32, %arg1 : i32, i32
  }
  func.func @transform_3(%arg0: i32, %arg1: i32) -> (i32, i32) {
    %c0_i32 = arith.constant 0 : i32
    %c0_i32_0 = arith.constant 0 : i32
    return %arg1, %c0_i32 : i32, i32
  }
  func.func @transform_4(%arg0: i32, %arg1: i32) -> (i32, i32) {
    %c0_i32 = arith.constant 0 : i32
    %c0_i32_0 = arith.constant 0 : i32
    %c0_i32_1 = arith.constant 0 : i32
    return %c0_i32, %c0_i32_0 : i32, i32
  }
  func.func @transform_5(%arg0: i32, %arg1: i32) -> (i32, i32) {
    %c0_i32 = arith.constant 0 : i32
    %c0_i32_0 = arith.constant 0 : i32
    return %arg0, %c0_i32 : i32, i32
  }
}

</mosaic_0001>

<llo_original>
// kernel: tpu_custom_call.1
$region0: #{tpu_custom_call.1}
  #allocation0 [shape = 'u32[]', space=smem, size = 0x4, offset = 0x4, fixed_abs, tag = 'smem constant byte address 0x4 - core index']
  #allocation1 [shape = 'u32[144,128]{1,0:T(1,128)}', space=vmem, size = 0x12000, scoped, tag = 'internal scratch']
  #allocation2 [shape = 'f32[8,64]{1,0:T(8,128)}', space=vmem, size = 0x1000, scoped, tag = 'scratch operand']
  %s0 = inlined_call_operand.vmem [shape: bf16[16,64], index: 0, kind: input, shape index: {}]
  %s1 = inlined_call_operand.vmem [shape: bf16[64,128], index: 1, kind: input, shape index: {}]
  %s2 = inlined_call_operand.vmem [shape: f32[1,128], index: 2, kind: input, shape index: {}]
  %s3 = inlined_call_operand.vmem [shape: bf16[128,64], index: 3, kind: input, shape index: {}]
  %s4 = inlined_call_operand.vmem [shape: f32[1,64], index: 4, kind: input, shape index: {}]
  %s5 = inlined_call_operand.hbm [shape: bf16[16,64], index: 5, kind: output, shape index: {}]
  %s6 = sld [smem:[#allocation0]]
  $region61: #{tpu_custom_call.1} parent=0
    _
  %s8 = ssub.s32 1, %s6
  %s9 = scalar_select 0, %s8, %s6
  $region1: #{tpu_custom_call.1} parent=0
    #allocation3 [shape = 'u8[4096]{0}', space=vmem, size = 0x1000, scoped, tag = 'output window, operand 0']
    #allocation4 [shape = 's32[2]{0}', space=sflag, size = 0x8, scoped, tag = 'scoped memory for tpu_custom_call.1']
    %10 = vsyncpa [#allocation4], 0
    %s11 = scalar_lea.sflag [#allocation4], 1
    %12 = vsyncpa %s11, 0
    loop: start=0, step=1, limit=4
    $region2: #{tpu_custom_call.1} parent=1 // loop_pre_header
      _
    $region3: #{tpu_custom_call.1} parent=1 // loop_header
      %s14 = sphi 0, %s18
      %p15 = scmp.ge.s32.totalorder %s14, 4
      %s21 = sphi 0, %s33
      %s22 = sphi 0, %s29
      %s23 = sphi 0, %s21
      %s24 = sphi 0, %s22
      %s25 = sphi 0, %s23
      %s26 = sphi 0, %s24
      %s36 = sphi 0, %s38
      %s39 = sphi 0, %s36
      %s40 = sphi 0, %s39
      %s56 = sphi 0, %s40
      %s62 = sphi 0, %s64
      %s65 = sphi 0, %s62
      %s66 = sphi 0, %s65
      %s82 = sphi 0, %s66
      %s88 = sphi 0, %s90
      %s91 = sphi 0, %s88
      %s92 = sphi 0, %s91
      %s108 = sphi 0, %s92
      %s114 = sphi 0, %s116
      %s117 = sphi 0, %s114
      %s118 = sphi 0, %s117
      %s134 = sphi 0, %s118
      %s138 = sphi 0, %s138
      %s140 = sphi 0, %s138
      %s141 = sphi 0, %s140
      %s155 = sphi 0, %s141
      %s161 = sphi 0, %s163
      %s164 = sphi 0, %s161
      %s165 = sphi 0, %s164
      %s181 = sphi 0, %s165
    $region4: #{tpu_custom_call.1} parent=1 // loop_header_branch
      %17 = sbr.rel (%p15) target = $region8
    $region5: #{tpu_custom_call.1} parent=1 // loop_body
      %s19 = ssub.s32 %s14, 1
      %s20 = ssub.s32 %s14, 2
      %s27 = sadd.s32 1, %s22
      %p28 = scmp.ge.s32.totalorder %s27, 1
      %s29 = scalar_select %p28, 0, %s27
      %s30 = sadd.s32 1, %s21
      %s31 = scalar_select %p28, %s30, %s21
      %p32 = scmp.ge.s32.totalorder %s31, 2
      %s33 = scalar_select %p32, 0, %s31
      %s34 = ssub.s32 %s21, %s33
      %p35 = scmp.eq.s32.totalorder %s34, 0
      %s37 = sadd.s32 %s36, 1
      %s38 = scalar_select %p35, %s36, %s37
      %p41 = pneg %p35
      %p42 = scmp.eq.s32.totalorder %s14, 1
      %p43 = por %p41, %p42
      %p44 = scmp.ne.s32.totalorder %s36, %s39
      %p45 = scmp.eq.s32.totalorder %s14, 0
      %p46 = por %p44, %p45
      %p47 = scmp.ne.s32.totalorder %s36, %s39
      %p48 = scmp.eq.s32.totalorder %s19, 1
      %p49 = por %p47, %p48
      %p50 = scmp.ne.s32.totalorder %s39, %s40
      %p51 = scmp.eq.s32.totalorder %s19, 0
      %p52 = por %p50, %p51
      %p53 = scmp.ne.s32.totalorder %s39, %s40
      %p54 = scmp.eq.s32.totalorder %s20, 1
      %p55 = por %p53, %p54
      %p57 = scmp.ne.s32.totalorder %s40, %s56
      %p58 = scmp.eq.s32.totalorder %s20, 0
      %p59 = por %p57, %p58
      %s60 = ssub.s32 %s22, %s29
      %p61 = scmp.eq.s32.totalorder %s60, 0
      %s63 = sadd.s32 %s62, 1
      %s64 = scalar_select %p61, %s62, %s63
      %p67 = pneg %p61
      %p68 = scmp.eq.s32.totalorder %s14, 1
      %p69 = por %p67, %p68
      %p70 = scmp.ne.s32.totalorder %s62, %s65
      %p71 = scmp.eq.s32.totalorder %s14, 0
      %p72 = por %p70, %p71
      %p73 = scmp.ne.s32.totalorder %s62, %s65
      %p74 = scmp.eq.s32.totalorder %s19, 1
      %p75 = por %p73, %p74
      %p76 = scmp.ne.s32.totalorder %s65, %s66
      %p77 = scmp.eq.s32.totalorder %s19, 0
      %p78 = por %p76, %p77
      %p79 = scmp.ne.s32.totalorder %s65, %s66
      %p80 = scmp.eq.s32.totalorder %s20, 1
      %p81 = por %p79, %p80
      %p83 = scmp.ne.s32.totalorder %s66, %s82
      %p84 = scmp.eq.s32.totalorder %s20, 0
      %p85 = por %p83, %p84
      %s86 = ssub.s32 %s22, %s29
      %p87 = scmp.eq.s32.totalorder %s86, 0
      %s89 = sadd.s32 %s88, 1
      %s90 = scalar_select %p87, %s88, %s89
      %p93 = pneg %p87
      %p94 = scmp.eq.s32.totalorder %s14, 1
      %p95 = por %p93, %p94
      %p96 = scmp.ne.s32.totalorder %s88, %s91
      %p97 = scmp.eq.s32.totalorder %s14, 0
      %p98 = por %p96, %p97
      %p99 = scmp.ne.s32.totalorder %s88, %s91
      %p100 = scmp.eq.s32.totalorder %s19, 1
      %p101 = por %p99, %p100
      %p102 = scmp.ne.s32.totalorder %s91, %s92
      %p103 = scmp.eq.s32.totalorder %s19, 0
      %p104 = por %p102, %p103
      %p105 = scmp.ne.s32.totalorder %s91, %s92
      %p106 = scmp.eq.s32.totalorder %s20, 1
      %p107 = por %p105, %p106
      %p109 = scmp.ne.s32.totalorder %s92, %s108
      %p110 = scmp.eq.s32.totalorder %s20, 0
      %p111 = por %p109, %p110
      %s112 = ssub.s32 %s22, %s29
      %p113 = scmp.eq.s32.totalorder %s112, 0
      %s115 = sadd.s32 %s114, 1
      %s116 = scalar_select %p113, %s114, %s115
      %p119 = pneg %p113
      %p120 = scmp.eq.s32.totalorder %s14, 1
      %p121 = por %p119, %p120
      %p122 = scmp.ne.s32.totalorder %s114, %s117
      %p123 = scmp.eq.s32.totalorder %s14, 0
      %p124 = por %p122, %p123
      %p125 = scmp.ne.s32.totalorder %s114, %s117
      %p126 = scmp.eq.s32.totalorder %s19, 1
      %p127 = por %p125, %p126
      %p128 = scmp.ne.s32.totalorder %s117, %s118
      %p129 = scmp.eq.s32.totalorder %s19, 0
      %p130 = por %p128, %p129
      %p131 = scmp.ne.s32.totalorder %s117, %s118
      %p132 = scmp.eq.s32.totalorder %s20, 1
      %p133 = por %p131, %p132
      %p135 = scmp.ne.s32.totalorder %s118, %s134
      %p136 = scmp.eq.s32.totalorder %s20, 0
      %p137 = por %p135, %p136
      %s139 = sadd.s32 %s138, 1
      %p142 = scmp.eq.s32.totalorder %s14, 1
      %p143 = scmp.ne.s32.totalorder %s138, %s140
      %p144 = scmp.eq.s32.totalorder %s14, 0
      %p145 = por %p143, %p144
      %p146 = scmp.ne.s32.totalorder %s138, %s140
      %p147 = scmp.eq.s32.totalorder %s19, 1
      %p148 = por %p146, %p147
      %p149 = scmp.ne.s32.totalorder %s140, %s141
      %p150 = scmp.eq.s32.totalorder %s19, 0
      %p151 = por %p149, %p150
      %p152 = scmp.ne.s32.totalorder %s140, %s141
      %p153 = scmp.eq.s32.totalorder %s20, 1
      %p154 = por %p152, %p153
      %p156 = scmp.ne.s32.totalorder %s141, %s155
      %p157 = scmp.eq.s32.totalorder %s20, 0
      %p158 = por %p156, %p157
      %s159 = ssub.s32 %s21, %s33
      %p160 = scmp.eq.s32.totalorder %s159, 0
      %s162 = sadd.s32 %s161, 1
      %s163 = scalar_select %p160, %s161, %s162
      %p166 = pneg %p160
      %p167 = scmp.eq.s32.totalorder %s14, 1
      %p168 = por %p166, %p167
      %p169 = scmp.ne.s32.totalorder %s161, %s164
      %p170 = scmp.eq.s32.totalorder %s14, 0
      %p171 = por %p169, %p170
      %p172 = scmp.ne.s32.totalorder %s161, %s164
      %p173 = scmp.eq.s32.totalorder %s19, 1
      %p174 = por %p172, %p173
      %p175 = scmp.ne.s32.totalorder %s164, %s165
      %p176 = scmp.eq.s32.totalorder %s19, 0
      %p177 = por %p175, %p176
      %p178 = scmp.ne.s32.totalorder %s164, %s165
      %p179 = scmp.eq.s32.totalorder %s20, 1
      %p180 = por %p178, %p179
      %p182 = scmp.ne.s32.totalorder %s165, %s181
      %p183 = scmp.eq.s32.totalorder %s20, 0
      %p184 = por %p182, %p183
      %p185 = scmp.le.s32.totalorder 1, %s14
      %p186 = scmp.lt.s32.totalorder %s14, 3
      %p187 = pnand %p185, %p186
      %p188 = pneg %p187
      // Predicated region
      $region9: #{tpu_custom_call.1} parent=5 // pred_check
        _
      $region10: #{tpu_custom_call.1} parent=5 // pred_check_branch
        %190 = sbr.rel (%p187) target = $region12
      $region11: #{tpu_custom_call.1} parent=5 // pred_region
        %s191 = ssub.s32 %s14, 1
        // Predicated region
        $region13: #{tpu_custom_call.1} parent=11 // pred_check
          %p192 = pneg %p78
        $region14: #{tpu_custom_call.1} parent=11 // pred_check_branch
          %194 = sbr.rel (%p192) target = $region16
        $region15: #{tpu_custom_call.1} parent=11 // pred_region
          %p195 = scmp.lt.s32.totalorder %s24, 0
          %s196 = scalar_select %p195, %s24, 0
          %s197 = smul.addr %s196, 4
          %s198 = scalar_lea.vmem %s1, %s197
        $region16: #{tpu_custom_call.1} parent=11 // pred_fallthru
          _
        // Predicated region
        $region17: #{tpu_custom_call.1} parent=11 // pred_check
          %p199 = pneg %p104
        $region18: #{tpu_custom_call.1} parent=11 // pred_check_branch
          %201 = sbr.rel (%p199) target = $region20
        $region19: #{tpu_custom_call.1} parent=11 // pred_region
          %p202 = scmp.lt.s32.totalorder %s24, 0
          %s203 = scalar_select %p202, %s24, 0
          %s204 = scalar_lea.vmem %s2, %s203
        $region20: #{tpu_custom_call.1} parent=11 // pred_fallthru
          _
        // Predicated region
        $region21: #{tpu_custom_call.1} parent=11 // pred_check
          %p205 = pneg %p130
        $region22: #{tpu_custom_call.1} parent=11 // pred_check_branch
          %207 = sbr.rel (%p205) target = $region24
        $region23: #{tpu_custom_call.1} parent=11 // pred_region
          %s208 = smul.u32 16, %s24
          %p209 = scmp.lt.s32.totalorder %s208, 15
          %s210 = scalar_select %p209, %s208, 15
          %s211 = smul.addr %s210, 4
          %s212 = scalar_lea.vmem %s3, %s211
          %s213 = smul.u32 16, %s24
        $region24: #{tpu_custom_call.1} parent=11 // pred_fallthru
          _
        // Predicated region
        $region25: #{tpu_custom_call.1} parent=11 // pred_check
          %p214 = pneg %p151
        $region26: #{tpu_custom_call.1} parent=11 // pred_check_branch
          %216 = sbr.rel (%p214) target = $region28
        $region27: #{tpu_custom_call.1} parent=11 // pred_region
          _
        $region28: #{tpu_custom_call.1} parent=11 // pred_fallthru
          _
      $region12: #{tpu_custom_call.1} parent=5 // pred_fallthru
        _
      %p217 = scmp.lt.s32.totalorder %s14, 2
      // Predicated region
      $region29: #{tpu_custom_call.1} parent=5 // pred_check
        %p218 = pneg %p217
      $region30: #{tpu_custom_call.1} parent=5 // pred_check_branch
        %220 = sbr.rel (%p218) target = $region32
      $region31: #{tpu_custom_call.1} parent=5 // pred_region
        // Predicated region
        $region33: #{tpu_custom_call.1} parent=31 // pred_check
          %p221 = pneg %p46
        $region34: #{tpu_custom_call.1} parent=31 // pred_check_branch
          %223 = sbr.rel (%p221) target = $region36
        $region35: #{tpu_custom_call.1} parent=31 // pred_region
          %p224 = scmp.lt.s32.totalorder %s21, 1
          %s225 = scalar_select %p224, %s21, 1
          %s226 = smul.addr %s225, 4
          %s227 = scalar_lea.vmem %s0, %s226
        $region36: #{tpu_custom_call.1} parent=31 // pred_fallthru
          _
      $region32: #{tpu_custom_call.1} parent=5 // pred_fallthru
        _
      %p228 = scmp.le.s32.totalorder 1, %s14
      %p229 = scmp.lt.s32.totalorder %s14, 3
      %p230 = pnand %p228, %p229
      %p231 = pneg %p230
      // Predicated region
      $region37: #{tpu_custom_call.1} parent=5 // pred_check
        _
      $region38: #{tpu_custom_call.1} parent=5 // pred_check_branch
        %233 = sbr.rel (%p230) target = $region40
      $region39: #{tpu_custom_call.1} parent=5 // pred_region
        %s234 = ssub.s32 %s14, 1
        %p235 = scmp.lt.s32.totalorder %s23, 1
        %s236 = scalar_select %p235, %s23, 1
        %s237 = smul.addr %s236, 4
        %s238 = scalar_lea.vmem %s0, %s237
        %p239 = pneg %p52
        %p240 = pneg %p49
        %p241 = scmp.lt.s32.totalorder %s24, 0
        %s242 = scalar_select %p241, %s24, 0
        %s243 = smul.addr %s242, 4
        %s244 = scalar_lea.vmem %s1, %s243
        %p245 = pneg %p78
        %p246 = pneg %p75
        %p247 = scmp.lt.s32.totalorder %s24, 0
        %s248 = scalar_select %p247, %s24, 0
        %s249 = scalar_lea.vmem %s2, %s248
        %p250 = pneg %p104
        %p251 = pneg %p101
        %s252 = smul.u32 16, %s24
        %p253 = scmp.lt.s32.totalorder %s252, 15
        %s254 = scalar_select %p253, %s252, 15
        %s255 = smul.addr %s254, 4
        %s256 = scalar_lea.vmem %s3, %s255
        %p257 = pneg %p130
        %p258 = pneg %p127
        %p259 = pneg %p151
        %p260 = pneg %p148
        %p261 = pneg %p177
        %p262 = pneg %p174
        %s263 = sand.u32 %s164, 1
        %s264 = scalar_lea.sflag [#allocation4], %s263
        %s265 = sand.u32 %s164, 1
        %s266 = smul.addr %s265, 4
        %s267 = scalar_lea.vmem [#allocation3], %s266
        %p268 = scmp.lt.s32.totalorder %s23, 1
        %s269 = scalar_select %p268, %s23, 1
        %s270 = smul.addr %s269, 4
        %s271 = scalar_lea.vmem %s0, %s270
        %p272 = scmp.lt.s32.totalorder %s24, 0
        %s273 = scalar_select %p272, %s24, 0
        %s274 = smul.addr %s273, 4
        %s275 = scalar_lea.vmem %s1, %s274
        %p276 = scmp.lt.s32.totalorder %s24, 0
        %s277 = scalar_select %p276, %s24, 0
        %s278 = scalar_lea.vmem %s2, %s277
        %s279 = smul.u32 16, %s24
        %p280 = scmp.lt.s32.totalorder %s279, 15
        %s281 = scalar_select %p280, %s279, 15
        %s282 = smul.addr %s281, 4
        %s283 = scalar_lea.vmem %s3, %s282
        %s284 = smul.u32 16, %s24
        %p286 = scmp.eq.s32.totalorder %s24, 0
        // Predicated region
        $region41: #{tpu_custom_call.1} parent=39 // pred_check
          %p287 = pneg %p286
        $region42: #{tpu_custom_call.1} parent=39 // pred_check_branch
          %289 = sbr.rel (%p287) target = $region44
        $region43: #{tpu_custom_call.1} parent=39 // pred_region
          %vm290 = vcmask 523264
          %291 = vst.msk [vmem:[#allocation2] sm:$0xff] %vm290, 0.0
        $region44: #{tpu_custom_call.1} parent=39 // pred_fallthru
          _
        %v292 = vld [vmem:[%s271] sm:$0xf]
        %v293 = vld [vmem:[%s275] sm:$0xf]
        %v294 = vld [vmem:[%s275 + $0x4] sm:$0xf]
        %v295 = vld [vmem:[%s275 + $0x8] sm:$0xf]
        %v296 = vld [vmem:[%s275 + $0xc] sm:$0xf]
        %v297 = vld [vmem:[%s275 + $0x10] sm:$0xf]
        %v298 = vld [vmem:[%s275 + $0x14] sm:$0xf]
        %v299 = vld [vmem:[%s275 + $0x18] sm:$0xf]
        %v300 = vld [vmem:[%s275 + $0x1c] sm:$0xf]
        %v301 = vld [vmem:[%s278] sm:$0x1]
        %v303 = vlaneseq
        %v304 = vshrl.u32 %v303, 7
        %v305 = vsub.s32 0, %v304
        %v306 = vrot.slane %v301, %v305
        %v316 = vunpack.c.l.b16 %v293
        %v317 = vunpack.c.l.b16 %v294
        %v318 = vunpack.c.l.b16 %v295
        %v319 = vunpack.c.l.b16 %v296
        %v320 = vunpack.c.l.b16 %v297
        %v321 = vunpack.c.l.b16 %v298
        %v322 = vunpack.c.l.b16 %v299
        %v323 = vunpack.c.l.b16 %v300
        %v324 = vpack.c.b16 %v317, %v316
        %v325 = vpack.c.b16 %v319, %v318
        %v326 = vpack.c.b16 %v321, %v320
        %v327 = vpack.c.b16 %v323, %v322
        %vm332 = vcmask 523264
        %v334 = vsel %vm332, %v292, 0
        %336 = vmatprep.subr.bf16.mxu0 0
        %337 = vmatpush1.bf16.msra.mxu0 %v324
        %338 = vmatprep.subr.bf16.mxu0 0
        %339 = vmatpush1.bf16.msra.mxu0 %v325
        %340 = vmatprep.subr.bf16.mxu0 0
        %341 = vmatpush1.bf16.msra.mxu0 %v326
        %342 = vmatprep.subr.bf16.mxu0 0
        %343 = vmatpush1.bf16.msra.mxu0 %v327
        %344 = vmatprep.subr.bf16.mxu0 0
        %345 = vmatpush1.bf16.msra.mxu0 0
        %346 = vmatprep.subr.bf16.mxu0 0
        %347 = vmatpush1.bf16.msra.mxu0 0
        %348 = vmatprep.subr.bf16.mxu0 0
        %349 = vmatpush1.bf16.msra.mxu0 0
        %350 = vmatprep.subr.bf16.mxu0 0
        %351 = vmatpush1.bf16.msra.mxu0 0
        %352 = vmatprep.subr.bf16.mxu0 0
        %353 = vmatpush1.bf16.msra.mxu0 0
        %354 = vmatprep.subr.bf16.mxu0 0
        %355 = vmatpush1.bf16.msra.mxu0 0
        %356 = vmatprep.subr.bf16.mxu0 0
        %357 = vmatpush1.bf16.msra.mxu0 0
        %358 = vmatprep.subr.bf16.mxu0 0
        %359 = vmatpush1.bf16.msra.mxu0 0
        %360 = vmatprep.subr.bf16.mxu0 0
        %361 = vmatpush1.bf16.msra.mxu0 0
        %362 = vmatprep.subr.bf16.mxu0 0
        %363 = vmatpush1.bf16.msra.mxu0 0
        %364 = vmatprep.subr.bf16.mxu0 0
        %365 = vmatpush1.bf16.msra.mxu0 0
        %366 = vmatprep.subr.bf16.mxu0 0
        %367 = vmatpush1.bf16.msra.mxu0 0
        %368 = vmatprep.mubr.bf16.mxu0 0
        %369 = vmatmul.mubr.bf16.gmra.mrb[0].mxu0 %v334
        %v370 = vpop.f32.mrb[0].mxu0
        %v371 = vadd.f32 %v306, %v370
        %v372 = vpop.f32.mrb[0].mxu0
        %v373 = vpop.f32.mrb[0].mxu0
        %v374 = vpop.f32.mrb[0].mxu0
        %375 = vdwg.mxu0
        %v376 = vmax.f32 %v371, 0.0
        %v377 = vld [vmem:[#allocation2] sm:$0xff]
        %v378 = vpack.c.bf16 %v376, %v376
        %v379 = vld [vmem:[%s283] sm:$0xf]
        %v380 = vld [vmem:[%s283 + $0x4] sm:$0xf]
        %v381 = vld [vmem:[%s283 + $0x8] sm:$0xf]
        %v382 = vld [vmem:[%s283 + $0xc] sm:$0xf]
        %v383 = vld [vmem:[%s283 + $0x10] sm:$0xf]
        %v384 = vld [vmem:[%s283 + $0x14] sm:$0xf]
        %v385 = vld [vmem:[%s283 + $0x18] sm:$0xf]
        %v386 = vld [vmem:[%s283 + $0x1c] sm:$0xf]
        %v387 = vld [vmem:[%s283 + $0x20] sm:$0xf]
        %v388 = vld [vmem:[%s283 + $0x24] sm:$0xf]
        %v389 = vld [vmem:[%s283 + $0x28] sm:$0xf]
        %v390 = vld [vmem:[%s283 + $0x2c] sm:$0xf]
        %v391 = vld [vmem:[%s283 + $0x30] sm:$0xf]
        %v392 = vld [vmem:[%s283 + $0x34] sm:$0xf]
        %v393 = vld [vmem:[%s283 + $0x38] sm:$0xf]
        %v394 = vld [vmem:[%s283 + $0x3c] sm:$0xf]
        %v411 = vunpack.c.l.b16 %v379
        %v412 = vunpack.c.l.b16 %v380
        %v413 = vunpack.c.l.b16 %v381
        %v414 = vunpack.c.l.b16 %v382
        %v415 = vunpack.c.l.b16 %v383
        %v416 = vunpack.c.l.b16 %v384
        %v417 = vunpack.c.l.b16 %v385
        %v418 = vunpack.c.l.b16 %v386
        %v419 = vunpack.c.l.b16 %v387
        %v420 = vunpack.c.l.b16 %v388
        %v421 = vunpack.c.l.b16 %v389
        %v422 = vunpack.c.l.b16 %v390
        %v423 = vunpack.c.l.b16 %v391
        %v424 = vunpack.c.l.b16 %v392
        %v425 = vunpack.c.l.b16 %v393
        %v426 = vunpack.c.l.b16 %v394
        %v427 = vpack.c.b16 %v412, %v411
        %v428 = vpack.c.b16 %v414, %v413
        %v429 = vpack.c.b16 %v416, %v415
        %v430 = vpack.c.b16 %v418, %v417
        %v431 = vpack.c.b16 %v420, %v419
        %v432 = vpack.c.b16 %v422, %v421
        %v433 = vpack.c.b16 %v424, %v423
        %v434 = vpack.c.b16 %v426, %v425
        %443 = vmatprep.subr.bf16.mxu0 0
        %444 = vmatpush1.bf16.msra.mxu0 %v427
        %445 = vmatprep.subr.bf16.mxu0 0
        %446 = vmatpush1.bf16.msra.mxu0 %v428
        %447 = vmatprep.subr.bf16.mxu0 0
        %448 = vmatpush1.bf16.msra.mxu0 %v429
        %449 = vmatprep.subr.bf16.mxu0 0
        %450 = vmatpush1.bf16.msra.mxu0 %v430
        %451 = vmatprep.subr.bf16.mxu0 0
        %452 = vmatpush1.bf16.msra.mxu0 %v431
        %453 = vmatprep.subr.bf16.mxu0 0
        %454 = vmatpush1.bf16.msra.mxu0 %v432
        %455 = vmatprep.subr.bf16.mxu0 0
        %456 = vmatpush1.bf16.msra.mxu0 %v433
        %457 = vmatprep.subr.bf16.mxu0 0
        %458 = vmatpush1.bf16.msra.mxu0 %v434
        %459 = vmatprep.subr.bf16.mxu0 0
        %460 = vmatpush1.bf16.msra.mxu0 0
        %461 = vmatprep.subr.bf16.mxu0 0
        %462 = vmatpush1.bf16.msra.mxu0 0
        %463 = vmatprep.subr.bf16.mxu0 0
        %464 = vmatpush1.bf16.msra.mxu0 0
        %465 = vmatprep.subr.bf16.mxu0 0
        %466 = vmatpush1.bf16.msra.mxu0 0
        %467 = vmatprep.subr.bf16.mxu0 0
        %468 = vmatpush1.bf16.msra.mxu0 0
        %469 = vmatprep.subr.bf16.mxu0 0
        %470 = vmatpush1.bf16.msra.mxu0 0
        %471 = vmatprep.subr.bf16.mxu0 0
        %472 = vmatpush1.bf16.msra.mxu0 0
        %473 = vmatprep.subr.bf16.mxu0 0
        %474 = vmatpush1.bf16.msra.mxu0 0
        %475 = vmatprep.mubr.bf16.mxu0 0
        %476 = vmatmul.mubr.bf16.gmra.mrb[0].mxu0 %v378
        %v477 = vpop.f32.mrb[0].mxu0
        %v478 = vadd.f32 0.0, %v477
        %v479 = vpop.f32.mrb[0].mxu0
        %v480 = vpop.f32.mrb[0].mxu0
        %v481 = vpop.f32.mrb[0].mxu0
        %482 = vdwg.mxu0
        %v483 = vadd.f32 %v377, %v478
        %484 = vst.msk [vmem:[#allocation2] sm:$0xff] %vm332, %v483
        // Predicated region
        $region45: #{tpu_custom_call.1} parent=39 // pred_check
          %p485 = pneg %p286
        $region46: #{tpu_custom_call.1} parent=39 // pred_check_branch
          %487 = sbr.rel (%p485) target = $region48
        $region47: #{tpu_custom_call.1} parent=39 // pred_region
          %v488 = vld [vmem:[#allocation2] sm:$0xff]
          %v489 = vld [vmem:[%s4] sm:$0x1]
          %v491 = vlaneseq
          %v492 = vshrl.u32 %v491, 7
          %v493 = vsub.s32 0, %v492
          %v494 = vrot.slane %v489, %v493
          %v496 = vadd.f32 %v488, %v494
          %v497 = vpack.c.bf16 %v496, %v496
          %vm498 = vcmask 519168
          %499 = vst.msk [vmem:[%s267] sm:$0xf] %vm498, %v497
        $region48: #{tpu_custom_call.1} parent=39 // pred_fallthru
          _
        %s500 = sand.u32 %s164, 1
        %s501 = scalar_lea.sflag [#allocation4], %s500
        %s502 = sand.u32 %s164, 1
        %s503 = smul.addr %s502, 4
        %s504 = scalar_lea.vmem [#allocation3], %s503
        // Predicated region
        $region49: #{tpu_custom_call.1} parent=39 // pred_check
          %p505 = pneg %p174
        $region50: #{tpu_custom_call.1} parent=39 // pred_check_branch
          %507 = sbr.rel (%p505) target = $region52
        $region51: #{tpu_custom_call.1} parent=39 // pred_region
          %s509 = ssub.s32 64, 64
          %510 = vsyncadd %s501, %s509
          %s511 = smul.addr %s23, 64
          %s512 = scalar_lea.hbm %s5, %s511
          %s514 = sshll.u32 %s504, 4
          %s515 = int_to_ptr.vmem [resolvable:$true] %s514
          %517 = dma.vmem_to_hbm [thread:$0]  %s515, 64, %s512, %s501
        $region52: #{tpu_custom_call.1} parent=39 // pred_fallthru
          _
      $region40: #{tpu_custom_call.1} parent=5 // pred_fallthru
        _
      %p518 = scmp.le.s32.totalorder 2, %s14
      // Predicated region
      $region53: #{tpu_custom_call.1} parent=5 // pred_check
        %p519 = pneg %p518
      $region54: #{tpu_custom_call.1} parent=5 // pred_check_branch
        %521 = sbr.rel (%p519) target = $region56
      $region55: #{tpu_custom_call.1} parent=5 // pred_region
        %s522 = ssub.s32 %s14, 2
        // Predicated region
        $region57: #{tpu_custom_call.1} parent=55 // pred_check
          %p523 = pneg %p180
        $region58: #{tpu_custom_call.1} parent=55 // pred_check_branch
          %525 = sbr.rel (%p523) target = $region60
        $region59: #{tpu_custom_call.1} parent=55 // pred_region
          %s526 = sand.u32 %s165, 1
          %s527 = scalar_lea.sflag [#allocation4], %s526
          %s528 = sand.u32 %s165, 1
          %s529 = smul.addr %s528, 4
          %s530 = scalar_lea.vmem [#allocation3], %s529
          %531 = dma.done %s527, 64
        $region60: #{tpu_custom_call.1} parent=55 // pred_fallthru
          _
      $region56: #{tpu_custom_call.1} parent=5 // pred_fallthru
        _
    $region6: #{tpu_custom_call.1} parent=1 // loop_footer
      %s18 = sadd.s32 1, %s14
    $region7: #{tpu_custom_call.1} parent=1 // loop_footer_branch
      %13 = sbr.rel target = $region3
    $region8: #{tpu_custom_call.1} parent=1 // loop_exit
      _
    %532 = vsyncpa [#allocation4], 1
    %s533 = scalar_lea.sflag [#allocation4], 1
    %534 = vsyncpa %s533, 1

</llo_original>
